<compile_context>
chip_gen: v7x
topology: tpu7x:2x2x1
jax: 0.10.0
libtpu: 0.0.40
codegen_flags: <defaults>
</compile_context>

<pallas_src>
import jax
import jax.numpy as jnp
from jax.experimental import pallas as pl
from jax.experimental.pallas import tpu as pltpu

# ----------------------------- hyper-params (small, consistent with module) ---
BATCH = 2          # number of agents / rows fed to forward()
INPUT_DIM = 16     # `input_shape` argument of RNN.__init__
HIDDEN = 32        # g_args('rnn_hidden_dim')
N_ACTIONS = 8      # g_args('n_actions')

# ----------------------------- packed parameter-slab layout -------------------
LANE = 4 * HIDDEN                     # 128 lanes = one full vreg width
_R_FC1 = 0                            # rows [  0, 16): fc1 weight [I, H] in cols [0, H)
_R_WX = INPUT_DIM                     # rows [ 16, 48): GRU x-side [H, 4H] = [W_ir|W_iz|W_in|0]
_R_WH = INPUT_DIM + HIDDEN            # rows [ 48, 80): GRU h-side [H, 4H] = [W_hr|W_hz|0|W_hn]
_R_FC2 = INPUT_DIM + 2 * HIDDEN       # rows [ 80,112): fc2 weight [H, A] in cols [0, A)
W_ROWS = INPUT_DIM + 3 * HIDDEN       # 112 rows total


# ----------------------------- Pallas kernel ----------------------------------
def rnn_forward_kernel(x_ref, h_ref, w_ref, b_ref, q_ref, hout_ref):
    H, A, I = HIDDEN, N_ACTIONS, INPUT_DIM
    x = x_ref[...]                    # [B, I]
    h = h_ref[...]                    # [B, H]

    # static, sublane-aligned slices of the packed slabs (views, no extra DMA)
    w1 = w_ref[_R_FC1:_R_FC1 + I, 0:H]     # [I, H]
    wx = w_ref[_R_WX:_R_WX + H, :]         # [H, 4H]
    wh = w_ref[_R_WH:_R_WH + H, :]         # [H, 4H]
    w2 = w_ref[_R_FC2:_R_FC2 + H, 0:A]     # [H, A]

    b1 = b_ref[0:1, 0:H]                   # [1, H]
    bg = b_ref[1:2, :]                     # [1, 4H]  = [b_ir+b_hr | b_iz+b_hz | b_in | b_hn]
    b2 = b_ref[2:3, 0:A]                   # [1, A]

    # fc1 + ReLU
    xr = jnp.maximum(
        jnp.dot(x, w1, preferred_element_type=jnp.float32) + b1, 0.0)

    # fused GRU gates: 2 MXU matmuls instead of 6; columns = [r | z | n_x | n_h]
    g = (jnp.dot(xr, wx, preferred_element_type=jnp.float32)
         + jnp.dot(h, wh, preferred_element_type=jnp.float32)
         + bg)
    r = jax.nn.sigmoid(g[:, 0:H])
    z = jax.nn.sigmoid(g[:, H:2 * H])
    n = jnp.tanh(g[:, 2 * H:3 * H] + r * g[:, 3 * H:4 * H])
    h_new = (1.0 - z) * n + z * h

    # fc2
    q = jnp.dot(h_new, w2, preferred_element_type=jnp.float32) + b2

    q_ref[...] = q
    hout_ref[...] = h_new


# ----------------------------- wrapper -----------------------------------------
def _rnn_forward_impl(inputs, h_in, w_slab, b_slab):
    B = inputs.shape[0]
    vmem = pl.BlockSpec(memory_space=pltpu.MemorySpace.VMEM)
    return pl.pallas_call(
        rnn_forward_kernel,
        out_shape=(
            jax.ShapeDtypeStruct((B, N_ACTIONS), jnp.float32),
            jax.ShapeDtypeStruct((B, HIDDEN), jnp.float32),
        ),
        in_specs=[vmem, vmem, vmem, vmem],
        out_specs=(vmem, vmem),
        input_output_aliases={1: 1},      # reuse the h_in HBM buffer for h_out
    )(inputs, h_in, w_slab, b_slab)


@jax.jit
def rnn_forward(inputs, hidden_state, packed):
    """inputs: [B, INPUT_DIM]; hidden_state: any shape reshapable to [-1, HIDDEN]."""
    h_in = hidden_state.reshape(-1, HIDDEN).astype(jnp.float32)
    return _rnn_forward_impl(inputs.astype(jnp.float32), h_in,
                             packed["w"], packed["b"])


# ----------------------------- parameter init & one-time packing ---------------
def init_params(key):
    ks = jax.random.split(key, 16)
    s_fc1 = 1.0 / jnp.sqrt(INPUT_DIM)
    s_gru = 1.0 / jnp.sqrt(HIDDEN)
    s_fc2 = 1.0 / jnp.sqrt(HIDDEN)

    def u(k, shape, s):
        return jax.random.uniform(k, shape, jnp.float32, -s, s)

    return {
        "w1": u(ks[0], (INPUT_DIM, HIDDEN), s_fc1),
        "b1": u(ks[1], (1, HIDDEN), s_fc1),
        "w_ir": u(ks[2], (HIDDEN, HIDDEN), s_gru),
        "w_iz": u(ks[3], (HIDDEN, HIDDEN), s_gru),
        "w_in": u(ks[4], (HIDDEN, HIDDEN), s_gru),
        "b_ir": u(ks[5], (1, HIDDEN), s_gru),
        "b_iz": u(ks[6], (1, HIDDEN), s_gru),
        "b_in": u(ks[7], (1, HIDDEN), s_gru),
        "w_hr": u(ks[8], (HIDDEN, HIDDEN), s_gru),
        "w_hz": u(ks[9], (HIDDEN, HIDDEN), s_gru),
        "w_hn": u(ks[10], (HIDDEN, HIDDEN), s_gru),
        "b_hr": u(ks[11], (1, HIDDEN), s_gru),
        "b_hz": u(ks[12], (1, HIDDEN), s_gru),
        "b_hn": u(ks[13], (1, HIDDEN), s_gru),
        "w2": u(ks[14], (HIDDEN, N_ACTIONS), s_fc2),
        "b2": u(ks[15], (1, N_ACTIONS), s_fc2),
    }


def pack_params(p):
    """One-time transform: torch-layout params -> 2 contiguous TPU slabs."""
    H, I, A = HIDDEN, INPUT_DIM, N_ACTIONS
    zHH = jnp.zeros((H, H), jnp.float32)
    wx = jnp.concatenate([p["w_ir"], p["w_iz"], p["w_in"], zHH], axis=1)   # [H, 4H]
    wh = jnp.concatenate([p["w_hr"], p["w_hz"], zHH, p["w_hn"]], axis=1)   # [H, 4H]

    w_slab = jnp.zeros((W_ROWS, LANE), jnp.float32)
    w_slab = w_slab.at[_R_FC1:_R_FC1 + I, 0:H].set(p["w1"])
    w_slab = w_slab.at[_R_WX:_R_WX + H, :].set(wx)
    w_slab = w_slab.at[_R_WH:_R_WH + H, :].set(wh)
    w_slab = w_slab.at[_R_FC2:_R_FC2 + H, 0:A].set(p["w2"])

    bg = jnp.concatenate([p["b_ir"] + p["b_hr"], p["b_iz"] + p["b_hz"],
                          p["b_in"], p["b_hn"]], axis=1)                   # [1, 4H]
    b_slab = jnp.zeros((3, LANE), jnp.float32)
    b_slab = b_slab.at[0:1, 0:H].set(p["b1"])
    b_slab = b_slab.at[1:2, :].set(bg)
    b_slab = b_slab.at[2:3, 0:A].set(p["b2"])

    return {"w": w_slab, "b": b_slab}


# ----------------------------- pure-JAX reference (correctness check) ----------
def rnn_forward_ref(inputs, hidden_state, p):
    h = hidden_state.reshape(-1, HIDDEN)
    x = jnp.maximum(inputs @ p["w1"] + p["b1"], 0.0)
    r = jax.nn.sigmoid(x @ p["w_ir"] + p["b_ir"] + h @ p["w_hr"] + p["b_hr"])
    z = jax.nn.sigmoid(x @ p["w_iz"] + p["b_iz"] + h @ p["w_hz"] + p["b_hz"])
    n = jnp.tanh(x @ p["w_in"] + p["b_in"] + r * (h @ p["w_hn"] + p["b_hn"]))
    h_new = (1.0 - z) * n + z * h
    q = h_new @ p["w2"] + p["b2"]
    return q, h_new


if __name__ == "__main__":
    key = jax.random.PRNGKey(0)
    k_p, k_x, k_h = jax.random.split(key, 3)

    params = init_params(k_p)
    packed = pack_params(params)

    inputs = jax.random.normal(k_x, (BATCH, INPUT_DIM), jnp.float32)
    # init_hidden() would give zeros; use random hidden to exercise the GRU math.
    hidden = jax.random.normal(k_h, (BATCH, HIDDEN), jnp.float32)

    q, h = rnn_forward(inputs, hidden, packed)
    jax.block_until_ready((q, h))

    q_ref, h_ref = rnn_forward_ref(inputs, hidden, params)
    assert q.shape == (BATCH, N_ACTIONS) and h.shape == (BATCH, HIDDEN)
    assert jnp.allclose(q, q_ref, atol=1e-5, rtol=1e-5)
    assert jnp.allclose(h, h_ref, atol=1e-5, rtol=1e-5)

    print("KERNEL_OK")
</pallas_src>

<mosaic_0001>
module attributes {stable_mosaic.version = 11 : i64} {
  func.func @rnn_forward_kernel(%arg0: memref<2x16xf32, #tpu.memory_space<vmem>>, %arg1: memref<2x32xf32, #tpu.memory_space<vmem>>, %arg2: memref<112x128xf32, #tpu.memory_space<vmem>>, %arg3: memref<3x128xf32, #tpu.memory_space<vmem>>, %arg4: memref<2x8xf32, #tpu.memory_space<vmem>>, %arg5: memref<2x32xf32, #tpu.memory_space<vmem>>) attributes {dimension_semantics = [], scalar_prefetch = 0 : i64, scratch_operands = 0 : i64, tpu.core_type = #tpu.core_type<tc>} {
    %c0 = arith.constant 0 : index
    %c0_0 = arith.constant 0 : index
    %0 = vector.load %arg0[%c0, %c0_0] : memref<2x16xf32, #tpu.memory_space<vmem>>, vector<2x16xf32>
    %c0_1 = arith.constant 0 : index
    %c0_2 = arith.constant 0 : index
    %1 = vector.load %arg1[%c0_1, %c0_2] : memref<2x32xf32, #tpu.memory_space<vmem>>, vector<2x32xf32>
    %c0_3 = arith.constant 0 : index
    %c0_4 = arith.constant 0 : index
    %2 = vector.load %arg2[%c0_3, %c0_4] : memref<112x128xf32, #tpu.memory_space<vmem>>, vector<16x32xf32>
    %c16 = arith.constant 16 : index
    %c0_5 = arith.constant 0 : index
    %3 = vector.load %arg2[%c16, %c0_5] : memref<112x128xf32, #tpu.memory_space<vmem>>, vector<32x128xf32>
    %c48 = arith.constant 48 : index
    %c0_6 = arith.constant 0 : index
    %4 = vector.load %arg2[%c48, %c0_6] : memref<112x128xf32, #tpu.memory_space<vmem>>, vector<32x128xf32>
    %c80 = arith.constant 80 : index
    %c0_7 = arith.constant 0 : index
    %5 = vector.load %arg2[%c80, %c0_7] : memref<112x128xf32, #tpu.memory_space<vmem>>, vector<32x8xf32>
    %c0_8 = arith.constant 0 : index
    %c0_9 = arith.constant 0 : index
    %6 = vector.load %arg3[%c0_8, %c0_9] : memref<3x128xf32, #tpu.memory_space<vmem>>, vector<1x32xf32>
    %c1 = arith.constant 1 : index
    %c0_10 = arith.constant 0 : index
    %7 = vector.load %arg3[%c1, %c0_10] : memref<3x128xf32, #tpu.memory_space<vmem>>, vector<1x128xf32>
    %c2 = arith.constant 2 : index
    %c0_11 = arith.constant 0 : index
    %8 = vector.load %arg3[%c2, %c0_11] : memref<3x128xf32, #tpu.memory_space<vmem>>, vector<1x8xf32>
    %cst = arith.constant dense<0.000000e+00> : vector<2x32xf32>
    %9 = tpu.matmul %0, %2, %cst {dimension_numbers = #tpu.dot_dimension_numbers<[1], [0], [0], [1], [0, 0, 1, 1], [], []>} : vector<2x16xf32>, vector<16x32xf32>, vector<2x32xf32> -> vector<2x32xf32>
    %10 = vector.broadcast %6 : vector<1x32xf32> to vector<2x32xf32>
    %11 = arith.addf %9, %10 : vector<2x32xf32>
    %cst_12 = arith.constant 0.000000e+00 : f32
    %12 = vector.broadcast %cst_12 : f32 to vector<2x32xf32>
    %13 = arith.maximumf %11, %12 : vector<2x32xf32>
    %cst_13 = arith.constant dense<0.000000e+00> : vector<2x128xf32>
    %14 = tpu.matmul %13, %3, %cst_13 {dimension_numbers = #tpu.dot_dimension_numbers<[1], [0], [0], [1], [0, 0, 1, 1], [], []>} : vector<2x32xf32>, vector<32x128xf32>, vector<2x128xf32> -> vector<2x128xf32>
    %cst_14 = arith.constant dense<0.000000e+00> : vector<2x128xf32>
    %15 = tpu.matmul %1, %4, %cst_14 {dimension_numbers = #tpu.dot_dimension_numbers<[1], [0], [0], [1], [0, 0, 1, 1], [], []>} : vector<2x32xf32>, vector<32x128xf32>, vector<2x128xf32> -> vector<2x128xf32>
    %16 = arith.addf %14, %15 : vector<2x128xf32>
    %17 = vector.broadcast %7 : vector<1x128xf32> to vector<2x128xf32>
    %18 = arith.addf %16, %17 : vector<2x128xf32>
    %19 = vector.extract_strided_slice %18 {offsets = [0, 0], sizes = [2, 32], strides = [1, 1]} : vector<2x128xf32> to vector<2x32xf32>
    %20 = arith.negf %19 : vector<2x32xf32>
    %21 = math.exp %20 : vector<2x32xf32>
    %cst_15 = arith.constant 1.000000e+00 : f32
    %22 = vector.broadcast %cst_15 : f32 to vector<2x32xf32>
    %23 = arith.addf %22, %21 : vector<2x32xf32>
    %24 = arith.divf %22, %23 : vector<2x32xf32>
    %25 = vector.extract_strided_slice %18 {offsets = [0, 32], sizes = [2, 32], strides = [1, 1]} : vector<2x128xf32> to vector<2x32xf32>
    %26 = arith.negf %25 : vector<2x32xf32>
    %27 = math.exp %26 : vector<2x32xf32>
    %cst_16 = arith.constant 1.000000e+00 : f32
    %28 = vector.broadcast %cst_16 : f32 to vector<2x32xf32>
    %29 = arith.addf %28, %27 : vector<2x32xf32>
    %30 = arith.divf %28, %29 : vector<2x32xf32>
    %31 = vector.extract_strided_slice %18 {offsets = [0, 64], sizes = [2, 32], strides = [1, 1]} : vector<2x128xf32> to vector<2x32xf32>
    %32 = vector.extract_strided_slice %18 {offsets = [0, 96], sizes = [2, 32], strides = [1, 1]} : vector<2x128xf32> to vector<2x32xf32>
    %33 = arith.mulf %24, %32 : vector<2x32xf32>
    %34 = arith.addf %31, %33 : vector<2x32xf32>
    %35 = math.tanh %34 : vector<2x32xf32>
    %cst_17 = arith.constant 1.000000e+00 : f32
    %36 = vector.broadcast %cst_17 : f32 to vector<2x32xf32>
    %37 = arith.subf %36, %30 : vector<2x32xf32>
    %38 = arith.mulf %37, %35 : vector<2x32xf32>
    %39 = arith.mulf %30, %1 : vector<2x32xf32>
    %40 = arith.addf %38, %39 : vector<2x32xf32>
    %cst_18 = arith.constant dense<0.000000e+00> : vector<2x8xf32>
    %41 = tpu.matmul %40, %5, %cst_18 {dimension_numbers = #tpu.dot_dimension_numbers<[1], [0], [0], [1], [0, 0, 1, 1], [], []>} : vector<2x32xf32>, vector<32x8xf32>, vector<2x8xf32> -> vector<2x8xf32>
    %42 = vector.broadcast %8 : vector<1x8xf32> to vector<2x8xf32>
    %43 = arith.addf %41, %42 : vector<2x8xf32>
    %c0_19 = arith.constant 0 : index
    %c0_20 = arith.constant 0 : index
    %44 = vector.load %arg4[%c0_19, %c0_20] : memref<2x8xf32, #tpu.memory_space<vmem>>, vector<2x8xf32>
    tpu.vector_store %arg4[%c0_19, %c0_20], %43 {strides = array<i32>} : memref<2x8xf32, #tpu.memory_space<vmem>>, vector<2x8xf32>,
    %c0_21 = arith.constant 0 : index
    %c0_22 = arith.constant 0 : index
    %45 = vector.load %arg5[%c0_21, %c0_22] : memref<2x32xf32, #tpu.memory_space<vmem>>, vector<2x32xf32>
    tpu.vector_store %arg5[%c0_21, %c0_22], %40 {strides = array<i32>} : memref<2x32xf32, #tpu.memory_space<vmem>>, vector<2x32xf32>,
    return
  }
}

</mosaic_0001>

<llo_original>
// kernel: rnn_forward.1
$region0: #{rnn_forward.1}
  #allocation0 [shape = 'u32[]', space=smem, size = 0x4, offset = 0x4, fixed_abs, tag = 'smem constant byte address 0x4 - core index']
  #allocation1 [shape = 'u32[144,128]{1,0:T(1,128)}', space=vmem, size = 0x12000, scoped, tag = 'internal scratch']
  %s0 = inlined_call_operand.vmem [shape: f32[2,16], index: 0, kind: input, shape index: {}]
  %s1 = inlined_call_operand.hbm [shape: f32[2,32], index: 1, kind: input, shape index: {}, may-alias: {1,5}]
  %s2 = inlined_call_operand.hbm [shape: f32[112,128], index: 2, kind: input, shape index: {}]
  %s3 = inlined_call_operand.vmem [shape: f32[3,128], index: 3, kind: input, shape index: {}]
  %s4 = inlined_call_operand.hbm [shape: f32[2,8], index: 4, kind: output, shape index: {0}]
  %s5 = inlined_call_operand.hbm [shape: f32[2,32], index: 5, kind: output, shape index: {1}, may-alias: {1,5}]
  %6 = xla_tuple %s4, %s5
  %s7 = sld [smem:[#allocation0]]
  $region42: #{rnn_forward.1} parent=0
    _
  %s9 = ssub.s32 1, %s7
  %s10 = scalar_select 0, %s9, %s7
  $region1: #{rnn_forward.1} parent=0
    #allocation2 [shape = 'u8[1024]{0}', space=vmem, size = 0x400, scoped, tag = 'input window, operand 1, single buffered']
    #allocation3 [shape = 's32[1]{0}', space=sflag, size = 0x4, scoped, tag = 'scoped memory for rnn_forward.1']
    #allocation4 [shape = 's32[1]{0}', space=sflag, size = 0x4, scoped, tag = 'scoped memory for rnn_forward.1']
    #allocation5 [shape = 'u8[57344]{0}', space=vmem, size = 0xe000, scoped, tag = 'input window, operand 2, single buffered']
    #allocation6 [shape = 's32[1]{0}', space=sflag, size = 0x4, scoped, tag = 'scoped memory for rnn_forward.1']
    #allocation7 [shape = 'u8[1024]{0}', space=vmem, size = 0x400, scoped, tag = 'output window, operand 0, single buffered']
    #allocation8 [shape = 'u8[1024]{0}', space=vmem, size = 0x400, scoped, tag = 'output window, operand 1, single buffered']
    #allocation9 [shape = 's32[1]{0}', space=sflag, size = 0x4, scoped, tag = 'scoped memory for rnn_forward.1']
    %11 = vsyncpa [#allocation3], 0
    %12 = vsyncpa [#allocation6], 0
    %13 = vsyncpa [#allocation4], 0
    %14 = vsyncpa [#allocation9], 0
    // Predicated region
    $region2: #{rnn_forward.1} parent=1 // pred_check
      _
    $region3: #{rnn_forward.1} parent=1 // pred_check_branch
      %16 = sbr.rel (0) target = $region5
    $region4: #{rnn_forward.1} parent=1 // pred_region
      _
    $region5: #{rnn_forward.1} parent=1 // pred_fallthru
      _
    // Predicated region
    $region6: #{rnn_forward.1} parent=1 // pred_check
      _
    $region7: #{rnn_forward.1} parent=1 // pred_check_branch
      %18 = sbr.rel (0) target = $region9
    $region8: #{rnn_forward.1} parent=1 // pred_region
      %s20 = ssub.s32 32, 32
      %21 = vsyncadd [#allocation3], %s20
      %s23 = sshll.u32 [#allocation2], 4
      %s24 = int_to_ptr.vmem [resolvable:$true] %s23
      %26 = dma.hbm_to_vmem [thread:$0]  %s1, 32, %s24, [#allocation3]
    $region9: #{rnn_forward.1} parent=1 // pred_fallthru
      _
    // Predicated region
    $region10: #{rnn_forward.1} parent=1 // pred_check
      _
    $region11: #{rnn_forward.1} parent=1 // pred_check_branch
      %28 = sbr.rel (0) target = $region13
    $region12: #{rnn_forward.1} parent=1 // pred_region
      %s30 = ssub.s32 1792, 1792
      %31 = vsyncadd [#allocation6], %s30
      %s32 = sshll.u32 [#allocation5], 4
      %s33 = int_to_ptr.vmem [resolvable:$true] %s32
      %38 = dma.hbm_to_vmem [thread:$0]  %s2, 1792, %s33, [#allocation6], 128, 128, 8
    $region13: #{rnn_forward.1} parent=1 // pred_fallthru
      _
    // Predicated region
    $region14: #{rnn_forward.1} parent=1 // pred_check
      _
    $region15: #{rnn_forward.1} parent=1 // pred_check_branch
      %40 = sbr.rel (0) target = $region17
    $region16: #{rnn_forward.1} parent=1 // pred_region
      _
    $region17: #{rnn_forward.1} parent=1 // pred_fallthru
      _
    // Predicated region
    $region18: #{rnn_forward.1} parent=1 // pred_check
      _
    $region19: #{rnn_forward.1} parent=1 // pred_check_branch
      %42 = sbr.rel (0) target = $region21
    $region20: #{rnn_forward.1} parent=1 // pred_region
      %43 = dma.done [#allocation3], 32
    $region21: #{rnn_forward.1} parent=1 // pred_fallthru
      _
    // Predicated region
    $region22: #{rnn_forward.1} parent=1 // pred_check
      _
    $region23: #{rnn_forward.1} parent=1 // pred_check_branch
      %45 = sbr.rel (0) target = $region25
    $region24: #{rnn_forward.1} parent=1 // pred_region
      %46 = dma.done [#allocation6], 1792
    $region25: #{rnn_forward.1} parent=1 // pred_fallthru
      _
    %v47 = vld [vmem:[%s0] sm:$0x3]
    %v48 = vld [vmem:[#allocation2] sm:$0x3]
    %v49 = vld [vmem:[#allocation5] sm:$0xff]
    %v50 = vld [vmem:[#allocation5 + $0x8] sm:$0xff]
    %v51 = vld [vmem:[#allocation5 + $0x10] sm:$0xff]
    %v52 = vld [vmem:[#allocation5 + $0x18] sm:$0xff]
    %v53 = vld [vmem:[#allocation5 + $0x20] sm:$0xff]
    %v54 = vld [vmem:[#allocation5 + $0x28] sm:$0xff]
    %v55 = vld [vmem:[#allocation5 + $0x30] sm:$0xff]
    %v56 = vld [vmem:[#allocation5 + $0x38] sm:$0xff]
    %v57 = vld [vmem:[#allocation5 + $0x40] sm:$0xff]
    %v58 = vld [vmem:[#allocation5 + $0x48] sm:$0xff]
    %v59 = vld [vmem:[#allocation5 + $0x50] sm:$0xff]
    %v60 = vld [vmem:[#allocation5 + $0x58] sm:$0xff]
    %v61 = vld [vmem:[#allocation5 + $0x60] sm:$0xff]
    %v62 = vld [vmem:[#allocation5 + $0x68] sm:$0xff]
    %v63 = vld [vmem:[%s3] sm:$0x1]
    %v64 = vld [vmem:[%s3 + $0x1] sm:$0x1]
    %v65 = vld [vmem:[%s3 + $0x2] sm:$0x1]
    %v66 = vlaneseq
    %v67 = vshrl.u32 %v66, 7
    %v68 = vsub.s32 0, %v67
    %v69 = vrot.slane %v63, %v68
    %vm70 = vcmask 130048
    %v72 = vsel %vm70, %v47, 0
    %74 = vmatprep.subr.mxu0 0.0
    %75 = vmatpush1.msra.mxu0 %v49
    %76 = vmatprep.subr.mxu0 0.0
    %77 = vmatpush1.msra.mxu0 %v50
    %78 = vmatprep.subr.mxu0 0.0
    %79 = vmatpush1.msra.mxu0 0.0
    %80 = vmatprep.subr.mxu0 0.0
    %81 = vmatpush1.msra.mxu0 0.0
    %82 = vmatprep.subr.mxu0 0.0
    %83 = vmatpush1.msra.mxu0 0.0
    %84 = vmatprep.subr.mxu0 0.0
    %85 = vmatpush1.msra.mxu0 0.0
    %86 = vmatprep.subr.mxu0 0.0
    %87 = vmatpush1.msra.mxu0 0.0
    %88 = vmatprep.subr.mxu0 0.0
    %89 = vmatpush1.msra.mxu0 0.0
    %90 = vmatprep.subr.mxu0 0.0
    %91 = vmatpush1.msra.mxu0 0.0
    %92 = vmatprep.subr.mxu0 0.0
    %93 = vmatpush1.msra.mxu0 0.0
    %94 = vmatprep.subr.mxu0 0.0
    %95 = vmatpush1.msra.mxu0 0.0
    %96 = vmatprep.subr.mxu0 0.0
    %97 = vmatpush1.msra.mxu0 0.0
    %98 = vmatprep.subr.mxu0 0.0
    %99 = vmatpush1.msra.mxu0 0.0
    %100 = vmatprep.subr.mxu0 0.0
    %101 = vmatpush1.msra.mxu0 0.0
    %102 = vmatprep.subr.mxu0 0.0
    %103 = vmatpush1.msra.mxu0 0.0
    %104 = vmatprep.subr.mxu0 0.0
    %105 = vmatpush1.msra.mxu0 0.0
    %106 = vmatprep.subr.mxu0 0.0
    %107 = vmatpush1.msra.mxu0 0.0
    %108 = vmatprep.subr.mxu0 0.0
    %109 = vmatpush1.msra.mxu0 0.0
    %110 = vmatprep.subr.mxu0 0.0
    %111 = vmatpush1.msra.mxu0 0.0
    %112 = vmatprep.subr.mxu0 0.0
    %113 = vmatpush1.msra.mxu0 0.0
    %114 = vmatprep.subr.mxu0 0.0
    %115 = vmatpush1.msra.mxu0 0.0
    %116 = vmatprep.subr.mxu0 0.0
    %117 = vmatpush1.msra.mxu0 0.0
    %118 = vmatprep.subr.mxu0 0.0
    %119 = vmatpush1.msra.mxu0 0.0
    %120 = vmatprep.subr.mxu0 0.0
    %121 = vmatpush1.msra.mxu0 0.0
    %122 = vmatprep.subr.mxu0 0.0
    %123 = vmatpush1.msra.mxu0 0.0
    %124 = vmatprep.subr.mxu0 0.0
    %125 = vmatpush1.msra.mxu0 0.0
    %126 = vmatprep.subr.mxu0 0.0
    %127 = vmatpush1.msra.mxu0 0.0
    %128 = vmatprep.subr.mxu0 0.0
    %129 = vmatpush1.msra.mxu0 0.0
    %130 = vmatprep.subr.mxu0 0.0
    %131 = vmatpush1.msra.mxu0 0.0
    %132 = vmatprep.subr.mxu0 0.0
    %133 = vmatpush1.msra.mxu0 0.0
    %134 = vmatprep.subr.mxu0 0.0
    %135 = vmatpush1.msra.mxu0 0.0
    %136 = vmatprep.subr.mxu0 0.0
    %137 = vmatpush1.msra.mxu0 0.0
    %138 = vmatprep.mubr.f32.mxu0 0.0
    %139 = vmatmul.mubr.f32.gmra.mrb[0].mxu0 %v72
    %v140 = vpop.f32.mrb[0].mxu0
    %v141 = vadd.f32 %v69, %v140
    %v142 = vpop.f32.mrb[0].mxu0
    %143 = vdwg.mxu0
    %v144 = vmax.f32 %v141, 0.0
    %vm145 = vcmask 261120
    %v147 = vsel %vm145, %v48, 0
    %149 = vmatprep.subr.mxu0 0.0
    %150 = vmatpush1.msra.mxu0 %v55
    %151 = vmatprep.subr.mxu0 0.0
    %152 = vmatpush1.msra.mxu0 %v56
    %153 = vmatprep.subr.mxu0 0.0
    %154 = vmatpush1.msra.mxu0 %v57
    %155 = vmatprep.subr.mxu0 0.0
    %156 = vmatpush1.msra.mxu0 %v58
    %157 = vmatprep.subr.mxu0 0.0
    %158 = vmatpush1.msra.mxu0 0.0
    %159 = vmatprep.subr.mxu0 0.0
    %160 = vmatpush1.msra.mxu0 0.0
    %161 = vmatprep.subr.mxu0 0.0
    %162 = vmatpush1.msra.mxu0 0.0
    %163 = vmatprep.subr.mxu0 0.0
    %164 = vmatpush1.msra.mxu0 0.0
    %165 = vmatprep.subr.mxu0 0.0
    %166 = vmatpush1.msra.mxu0 0.0
    %167 = vmatprep.subr.mxu0 0.0
    %168 = vmatpush1.msra.mxu0 0.0
    %169 = vmatprep.subr.mxu0 0.0
    %170 = vmatpush1.msra.mxu0 0.0
    %171 = vmatprep.subr.mxu0 0.0
    %172 = vmatpush1.msra.mxu0 0.0
    %173 = vmatprep.subr.mxu0 0.0
    %174 = vmatpush1.msra.mxu0 0.0
    %175 = vmatprep.subr.mxu0 0.0
    %176 = vmatpush1.msra.mxu0 0.0
    %177 = vmatprep.subr.mxu0 0.0
    %178 = vmatpush1.msra.mxu0 0.0
    %179 = vmatprep.subr.mxu0 0.0
    %180 = vmatpush1.msra.mxu0 0.0
    %181 = vmatprep.subr.mxu0 0.0
    %182 = vmatpush1.msra.mxu0 0.0
    %183 = vmatprep.subr.mxu0 0.0
    %184 = vmatpush1.msra.mxu0 0.0
    %185 = vmatprep.subr.mxu0 0.0
    %186 = vmatpush1.msra.mxu0 0.0
    %187 = vmatprep.subr.mxu0 0.0
    %188 = vmatpush1.msra.mxu0 0.0
    %189 = vmatprep.subr.mxu0 0.0
    %190 = vmatpush1.msra.mxu0 0.0
    %191 = vmatprep.subr.mxu0 0.0
    %192 = vmatpush1.msra.mxu0 0.0
    %193 = vmatprep.subr.mxu0 0.0
    %194 = vmatpush1.msra.mxu0 0.0
    %195 = vmatprep.subr.mxu0 0.0
    %196 = vmatpush1.msra.mxu0 0.0
    %197 = vmatprep.subr.mxu0 0.0
    %198 = vmatpush1.msra.mxu0 0.0
    %199 = vmatprep.subr.mxu0 0.0
    %200 = vmatpush1.msra.mxu0 0.0
    %201 = vmatprep.subr.mxu0 0.0
    %202 = vmatpush1.msra.mxu0 0.0
    %203 = vmatprep.subr.mxu0 0.0
    %204 = vmatpush1.msra.mxu0 0.0
    %205 = vmatprep.subr.mxu0 0.0
    %206 = vmatpush1.msra.mxu0 0.0
    %207 = vmatprep.subr.mxu0 0.0
    %208 = vmatpush1.msra.mxu0 0.0
    %209 = vmatprep.subr.mxu0 0.0
    %210 = vmatpush1.msra.mxu0 0.0
    %211 = vmatprep.subr.mxu0 0.0
    %212 = vmatpush1.msra.mxu0 0.0
    %213 = vmatprep.mubr.f32.mxu0 0.0
    %214 = vmatmul.mubr.f32.gmra.mrb[0].mxu0 %v147
    %v215 = vpop.f32.mrb[0].mxu0
    %v216 = vadd.f32 0.0, %v215
    %v217 = vpop.f32.mrb[0].mxu0
    %218 = vdwg.mxu0
    %v220 = vsel %vm145, %v144, 0
    %222 = vmatprep.subr.mxu0 0.0
    %223 = vmatpush1.msra.mxu0 %v51
    %224 = vmatprep.subr.mxu0 0.0
    %225 = vmatpush1.msra.mxu0 %v52
    %226 = vmatprep.subr.mxu0 0.0
    %227 = vmatpush1.msra.mxu0 %v53
    %228 = vmatprep.subr.mxu0 0.0
    %229 = vmatpush1.msra.mxu0 %v54
    %230 = vmatprep.subr.mxu0 0.0
    %231 = vmatpush1.msra.mxu0 0.0
    %232 = vmatprep.subr.mxu0 0.0
    %233 = vmatpush1.msra.mxu0 0.0
    %234 = vmatprep.subr.mxu0 0.0
    %235 = vmatpush1.msra.mxu0 0.0
    %236 = vmatprep.subr.mxu0 0.0
    %237 = vmatpush1.msra.mxu0 0.0
    %238 = vmatprep.subr.mxu0 0.0
    %239 = vmatpush1.msra.mxu0 0.0
    %240 = vmatprep.subr.mxu0 0.0
    %241 = vmatpush1.msra.mxu0 0.0
    %242 = vmatprep.subr.mxu0 0.0
    %243 = vmatpush1.msra.mxu0 0.0
    %244 = vmatprep.subr.mxu0 0.0
    %245 = vmatpush1.msra.mxu0 0.0
    %246 = vmatprep.subr.mxu0 0.0
    %247 = vmatpush1.msra.mxu0 0.0
    %248 = vmatprep.subr.mxu0 0.0
    %249 = vmatpush1.msra.mxu0 0.0
    %250 = vmatprep.subr.mxu0 0.0
    %251 = vmatpush1.msra.mxu0 0.0
    %252 = vmatprep.subr.mxu0 0.0
    %253 = vmatpush1.msra.mxu0 0.0
    %254 = vmatprep.subr.mxu0 0.0
    %255 = vmatpush1.msra.mxu0 0.0
    %256 = vmatprep.subr.mxu0 0.0
    %257 = vmatpush1.msra.mxu0 0.0
    %258 = vmatprep.subr.mxu0 0.0
    %259 = vmatpush1.msra.mxu0 0.0
    %260 = vmatprep.subr.mxu0 0.0
    %261 = vmatpush1.msra.mxu0 0.0
    %262 = vmatprep.subr.mxu0 0.0
    %263 = vmatpush1.msra.mxu0 0.0
    %264 = vmatprep.subr.mxu0 0.0
    %265 = vmatpush1.msra.mxu0 0.0
    %266 = vmatprep.subr.mxu0 0.0
    %267 = vmatpush1.msra.mxu0 0.0
    %268 = vmatprep.subr.mxu0 0.0
    %269 = vmatpush1.msra.mxu0 0.0
    %270 = vmatprep.subr.mxu0 0.0
    %271 = vmatpush1.msra.mxu0 0.0
    %272 = vmatprep.subr.mxu0 0.0
    %273 = vmatpush1.msra.mxu0 0.0
    %274 = vmatprep.subr.mxu0 0.0
    %275 = vmatpush1.msra.mxu0 0.0
    %276 = vmatprep.subr.mxu0 0.0
    %277 = vmatpush1.msra.mxu0 0.0
    %278 = vmatprep.subr.mxu0 0.0
    %279 = vmatpush1.msra.mxu0 0.0
    %280 = vmatprep.subr.mxu0 0.0
    %281 = vmatpush1.msra.mxu0 0.0
    %282 = vmatprep.subr.mxu0 0.0
    %283 = vmatpush1.msra.mxu0 0.0
    %284 = vmatprep.subr.mxu0 0.0
    %285 = vmatpush1.msra.mxu0 0.0
    %286 = vmatprep.mubr.f32.mxu0 0.0
    %287 = vmatmul.mubr.f32.gmra.mrb[0].mxu0 %v220
    %v288 = vpop.f32.mrb[0].mxu0
    %v289 = vadd.f32 %v216, %v288
    %v290 = vpop.f32.mrb[0].mxu0
    %291 = vdwg.mxu0
    %v292 = vlaneseq
    %v293 = vshrl.u32 %v292, 7
    %v294 = vsub.s32 0, %v293
    %v295 = vrot.slane %v64, %v294
    %v296 = vadd.f32 %v289, %v295
    %v297 = vxor.u32 %v296, 2147483648
    %v298 = vmul.f32 %v297, 1.442695
    %v299 = vpow.pop %v298
    %v300 = vadd.f32 %v299, 1.0
    %v301 = vrcp.pop %v300
    %v302 = vmul.f32 1.0, %v301
    %304 = vrot.lane.b32.xlu0 %v296, 32
    %v305 = vpop.permute.xlu0 %304
    %v307 = vmul.f32 %v302, %v305
    %309 = vrot.lane.b32.xlu0 %v307, 64
    %v310 = vpop.permute.xlu0 %309
    %v312 = vadd.f32 %v296, %v310
    %v313 = vtanh.pop %v312
    %v314 = vsub.f32 1.0, %v302
    %316 = vrot.lane.b32.xlu0 %v313, 96
    %v317 = vpop.permute.xlu0 %316
    %v319 = vmul.f32 %v314, %v317
    %320 = vrot.lane.b32.xlu0 %v48, 32
    %v321 = vpop.permute.xlu0 %320
    %v323 = vmul.f32 %v302, %v321
    %v324 = vadd.f32 %v319, %v323
    %v325 = vlaneseq
    %v326 = vshrl.u32 %v325, 7
    %v327 = vsub.s32 0, %v326
    %v328 = vrot.slane %v65, %v327
    %330 = vrot.lane.b32.xlu0 %v324, 96
    %v331 = vpop.permute.xlu0 %330
    %v332 = vsel %vm145, %v331, 0
    %334 = vmatprep.subr.mxu0 0.0
    %335 = vmatpush1.msra.mxu0 %v59
    %336 = vmatprep.subr.mxu0 0.0
    %337 = vmatpush1.msra.mxu0 %v60
    %338 = vmatprep.subr.mxu0 0.0
    %339 = vmatpush1.msra.mxu0 %v61
    %340 = vmatprep.subr.mxu0 0.0
    %341 = vmatpush1.msra.mxu0 %v62
    %342 = vmatprep.subr.mxu0 0.0
    %343 = vmatpush1.msra.mxu0 0.0
    %344 = vmatprep.subr.mxu0 0.0
    %345 = vmatpush1.msra.mxu0 0.0
    %346 = vmatprep.subr.mxu0 0.0
    %347 = vmatpush1.msra.mxu0 0.0
    %348 = vmatprep.subr.mxu0 0.0
    %349 = vmatpush1.msra.mxu0 0.0
    %350 = vmatprep.subr.mxu0 0.0
    %351 = vmatpush1.msra.mxu0 0.0
    %352 = vmatprep.subr.mxu0 0.0
    %353 = vmatpush1.msra.mxu0 0.0
    %354 = vmatprep.subr.mxu0 0.0
    %355 = vmatpush1.msra.mxu0 0.0
    %356 = vmatprep.subr.mxu0 0.0
    %357 = vmatpush1.msra.mxu0 0.0
    %358 = vmatprep.subr.mxu0 0.0
    %359 = vmatpush1.msra.mxu0 0.0
    %360 = vmatprep.subr.mxu0 0.0
    %361 = vmatpush1.msra.mxu0 0.0
    %362 = vmatprep.subr.mxu0 0.0
    %363 = vmatpush1.msra.mxu0 0.0
    %364 = vmatprep.subr.mxu0 0.0
    %365 = vmatpush1.msra.mxu0 0.0
    %366 = vmatprep.subr.mxu0 0.0
    %367 = vmatpush1.msra.mxu0 0.0
    %368 = vmatprep.subr.mxu0 0.0
    %369 = vmatpush1.msra.mxu0 0.0
    %370 = vmatprep.subr.mxu0 0.0
    %371 = vmatpush1.msra.mxu0 0.0
    %372 = vmatprep.subr.mxu0 0.0
    %373 = vmatpush1.msra.mxu0 0.0
    %374 = vmatprep.subr.mxu0 0.0
    %375 = vmatpush1.msra.mxu0 0.0
    %376 = vmatprep.subr.mxu0 0.0
    %377 = vmatpush1.msra.mxu0 0.0
    %378 = vmatprep.subr.mxu0 0.0
    %379 = vmatpush1.msra.mxu0 0.0
    %380 = vmatprep.subr.mxu0 0.0
    %381 = vmatpush1.msra.mxu0 0.0
    %382 = vmatprep.subr.mxu0 0.0
    %383 = vmatpush1.msra.mxu0 0.0
    %384 = vmatprep.subr.mxu0 0.0
    %385 = vmatpush1.msra.mxu0 0.0
    %386 = vmatprep.subr.mxu0 0.0
    %387 = vmatpush1.msra.mxu0 0.0
    %388 = vmatprep.subr.mxu0 0.0
    %389 = vmatpush1.msra.mxu0 0.0
    %390 = vmatprep.subr.mxu0 0.0
    %391 = vmatpush1.msra.mxu0 0.0
    %392 = vmatprep.subr.mxu0 0.0
    %393 = vmatpush1.msra.mxu0 0.0
    %394 = vmatprep.subr.mxu0 0.0
    %395 = vmatpush1.msra.mxu0 0.0
    %396 = vmatprep.subr.mxu0 0.0
    %397 = vmatpush1.msra.mxu0 0.0
    %398 = vmatprep.mubr.f32.mxu0 0.0
    %399 = vmatmul.mubr.f32.gmra.mrb[0].mxu0 %v332
    %v400 = vpop.f32.mrb[0].mxu0
    %v401 = vadd.f32 %v328, %v400
    %v402 = vpop.f32.mrb[0].mxu0
    %403 = vdwg.mxu0
    %vm404 = vcmask 58368
    %405 = vst.msk [vmem:[#allocation7] sm:$0x3] %vm404, %v401
    %vm407 = vcmask 254976
    %408 = vst.msk [vmem:[#allocation8] sm:$0x3] %vm407, %v331
    // Predicated region
    $region26: #{rnn_forward.1} parent=1 // pred_check
      _
    $region27: #{rnn_forward.1} parent=1 // pred_check_branch
      %410 = sbr.rel (0) target = $region29
    $region28: #{rnn_forward.1} parent=1 // pred_region
      %s412 = ssub.s32 32, 32
      %413 = vsyncadd [#allocation4], %s412
      %s415 = sshll.u32 [#allocation7], 4
      %s416 = int_to_ptr.vmem [resolvable:$true] %s415
      %418 = dma.vmem_to_hbm [thread:$0]  %s416, 32, %s4, [#allocation4]
    $region29: #{rnn_forward.1} parent=1 // pred_fallthru
      _
    // Predicated region
    $region30: #{rnn_forward.1} parent=1 // pred_check
      _
    $region31: #{rnn_forward.1} parent=1 // pred_check_branch
      %420 = sbr.rel (0) target = $region33
    $region32: #{rnn_forward.1} parent=1 // pred_region
      %s422 = ssub.s32 32, 32
      %423 = vsyncadd [#allocation9], %s422
      %s425 = sshll.u32 [#allocation8], 4
      %s426 = int_to_ptr.vmem [resolvable:$true] %s425
      %428 = dma.vmem_to_hbm [thread:$0]  %s426, 32, %s5, [#allocation9]
    $region33: #{rnn_forward.1} parent=1 // pred_fallthru
      _
    // Predicated region
    $region34: #{rnn_forward.1} parent=1 // pred_check
      _
    $region35: #{rnn_forward.1} parent=1 // pred_check_branch
      %430 = sbr.rel (0) target = $region37
    $region36: #{rnn_forward.1} parent=1 // pred_region
      %431 = dma.done [#allocation4], 32
    $region37: #{rnn_forward.1} parent=1 // pred_fallthru
      _
    // Predicated region
    $region38: #{rnn_forward.1} parent=1 // pred_check
      _
    $region39: #{rnn_forward.1} parent=1 // pred_check_branch
      %433 = sbr.rel (0) target = $region41
    $region40: #{rnn_forward.1} parent=1 // pred_region
      %434 = dma.done [#allocation9], 32
    $region41: #{rnn_forward.1} parent=1 // pred_fallthru
      _
    %435 = vsyncpa [#allocation3], 1
    %436 = vsyncpa [#allocation6], 1
    %437 = vsyncpa [#allocation4], 1
    %438 = vsyncpa [#allocation9], 1

</llo_original>
